<compile_context>
chip_gen: v7x
topology: tpu7x:2x2x1
jax: 0.10.0
libtpu: 0.0.40
codegen_flags: <defaults>
</compile_context>

<pallas_src>
import jax
import jax.numpy as jnp
from jax.experimental import pallas as pl
from jax.experimental.pallas import tpu as pltpu


def gmlp_kernel(x_ref, w1_ref, b1_ref, w2_ref, b2_ref, o_ref):
    # Hidden layer: cast x to bf16 in-kernel for the MXU, f32 accumulate,
    # bias + ReLU on the VPU.
    x_bf = x_ref[...].astype(jnp.bfloat16)
    h = jnp.dot(x_bf, w1_ref[...], preferred_element_type=jnp.float32)
    h = jnp.maximum(h + b1_ref[...], 0.0)
    # Output layer: cast h to bf16 for the MXU, f32 accumulate, bias.
    logits = jnp.dot(h.astype(jnp.bfloat16), w2_ref[...],
                     preferred_element_type=jnp.float32)
    logits = logits + b2_ref[...]
    # Numerically stable log_softmax over the (un-padded) class axis.
    m = jnp.max(logits, axis=-1, keepdims=True)
    z = logits - m
    lse = jnp.log(jnp.sum(jnp.exp(z), axis=-1, keepdims=True))
    o_ref[...] = (z - lse).astype(o_ref.dtype)


def _round_up(v, m):
    return (v + m - 1) // m * m


def gmlp_forward(x, w1, b1, w2, b2, *, tile_n=8192):
    """Fused GMLP forward. x: (N, dim_in) f32 -> (N, dim_out) f32 log-probs.

    Weights are given pre-transposed: w1 (dim_in, dim_hidden),
    w2 (dim_hidden, dim_out); biases b1 (dim_hidden,), b2 (dim_out,).
    """
    n, dim_in = x.shape
    dim_hidden = w1.shape[1]
    dim_out = w2.shape[1]

    # Pad only the hidden dim, to exactly 128 lanes (zeros are inert through
    # Linear+ReLU and W2's zero rows). dim_in / dim_out stay un-padded so x
    # reads and out writes carry no wasted HBM bytes.
    hid_p = max(_round_up(dim_hidden, 128), 128)

    w1_p = jnp.zeros((dim_in, hid_p), jnp.bfloat16)
    w1_p = w1_p.at[:, :dim_hidden].set(w1.astype(jnp.bfloat16))
    b1_p = jnp.zeros((1, hid_p), jnp.float32)
    b1_p = b1_p.at[:, :dim_hidden].set(b1.reshape(1, dim_hidden).astype(jnp.float32))
    w2_p = jnp.zeros((hid_p, dim_out), jnp.bfloat16)
    w2_p = w2_p.at[:dim_hidden, :].set(w2.astype(jnp.bfloat16))
    b2_p = b2.reshape(1, dim_out).astype(jnp.float32)

    # Row tile: multiple of 16 (bf16 sublane packing of the x tile). A partial
    # last block is handled by Mosaic's masked writeback: out-of-range rows
    # compute on padded data and are discarded (all math is row-independent).
    tile_n = _round_up(max(16, min(tile_n, n)), 16)
    if n >= 2048:
        # Keep >= 2 grid steps so the "parallel" row axis can be sharded
        # across both TensorCores on v7x (irrelevant on 1-TC v5e/v6e).
        tile_n = min(tile_n, _round_up(-(-n // 2), 16))
    grid = (pl.cdiv(n, tile_n),)

    flops = 2 * n * (dim_in * hid_p + hid_p * dim_out)
    bytes_accessed = (x.size * 4 + w1_p.size * 2 + w2_p.size * 2
                      + (b1_p.size + b2_p.size) * 4 + n * dim_out * 4)
    cost = pl.CostEstimate(flops=flops,
                           transcendentals=n * (dim_out + 1),
                           bytes_accessed=bytes_accessed)

    return pl.pallas_call(
        gmlp_kernel,
        out_shape=jax.ShapeDtypeStruct((n, dim_out), jnp.float32),
        grid=grid,
        in_specs=[
            pl.BlockSpec((tile_n, dim_in), lambda i: (i, 0)),   # x: row-tiled, f32
            pl.BlockSpec((dim_in, hid_p), lambda i: (0, 0)),    # W1: VMEM-resident
            pl.BlockSpec((1, hid_p), lambda i: (0, 0)),         # b1: resident
            pl.BlockSpec((hid_p, dim_out), lambda i: (0, 0)),   # W2: resident
            pl.BlockSpec((1, dim_out), lambda i: (0, 0)),       # b2: resident
        ],
        out_specs=pl.BlockSpec((tile_n, dim_out), lambda i: (i, 0)),
        compiler_params=pltpu.CompilerParams(
            dimension_semantics=("parallel",)),
        cost_estimate=cost,
    )(x, w1_p, b1_p, w2_p, b2_p)


def init_linear(key, fan_in, fan_out):
    """Deterministic PyTorch-style Linear init; returns W as (fan_in, fan_out)."""
    kw, kb = jax.random.split(key)
    bound = 1.0 / jnp.sqrt(jnp.float32(fan_in))
    w = jax.random.uniform(kw, (fan_in, fan_out), jnp.float32, -bound, bound)
    b = jax.random.uniform(kb, (fan_out,), jnp.float32, -bound, bound)
    return w, b


if __name__ == "__main__":
    # GMLP(dim_in=16, dim_out=8, dim_hidden=32, num_hidden=1), N=64 nodes.
    N, DIM_IN, DIM_HIDDEN, DIM_OUT = 64, 16, 32, 8

    key = jax.random.PRNGKey(0)
    kx, k1, k2 = jax.random.split(key, 3)
    x = jax.random.normal(kx, (N, DIM_IN), jnp.float32)
    # edge_index is accepted by GMLP.forward but unused; build it for parity.
    edge_index = jnp.zeros((2, 4), jnp.int32)

    w1, b1 = init_linear(k1, DIM_IN, DIM_HIDDEN)
    w2, b2 = init_linear(k2, DIM_HIDDEN, DIM_OUT)

    out = gmlp_forward(x, w1, b1, w2, b2)
    jax.block_until_ready(out)
    assert out.shape == (N, DIM_OUT) and out.dtype == jnp.float32

    # Reference 1: same bf16-input / f32-accumulate numerics as the kernel.
    x16 = x.astype(jnp.bfloat16)
    h_m = jnp.maximum(
        jnp.dot(x16, w1.astype(jnp.bfloat16), preferred_element_type=jnp.float32) + b1, 0.0)
    logits_m = jnp.dot(h_m.astype(jnp.bfloat16), w2.astype(jnp.bfloat16),
                       preferred_element_type=jnp.float32) + b2
    ref_match = jax.nn.log_softmax(logits_m, axis=-1)
    assert jnp.allclose(out, ref_match, atol=2e-3, rtol=2e-3), "mismatch vs bf16-matched reference"

    # Reference 2: full-f32 module semantics (bf16 slack in tolerance).
    ref_f32 = jax.nn.log_softmax(jnp.maximum(x @ w1 + b1, 0.0) @ w2 + b2, axis=-1)
    assert jnp.allclose(out, ref_f32, atol=5e-2, rtol=5e-2), "mismatch vs f32 reference"

    print("KERNEL_OK")
</pallas_src>

<mosaic_0001>
module attributes {stable_mosaic.version = 11 : i64} {
  func.func @gmlp_kernel(%arg0: i32, %arg1: memref<64x16xf32, #tpu.memory_space<vmem>>, %arg2: memref<16x128xbf16, #tpu.memory_space<vmem>>, %arg3: memref<1x128xf32, #tpu.memory_space<vmem>>, %arg4: memref<128x8xbf16, #tpu.memory_space<vmem>>, %arg5: memref<1x8xf32, #tpu.memory_space<vmem>>, %arg6: memref<64x8xf32, #tpu.memory_space<vmem>>) attributes {dimension_semantics = [#tpu.dimension_semantics<parallel>], iteration_bounds = array<i64: 1>, scalar_prefetch = 0 : i64, scratch_operands = 0 : i64, tpu.core_type = #tpu.core_type<tc>, window_params = [{transform_indices = @transform_0, window_bounds = array<i64: 64, 16>}, {pipeline_mode = #tpu.pipeline_mode<synchronous>, transform_indices = @transform_1, window_bounds = array<i64: 16, 128>}, {pipeline_mode = #tpu.pipeline_mode<synchronous>, transform_indices = @transform_2, window_bounds = array<i64: 1, 128>}, {pipeline_mode = #tpu.pipeline_mode<synchronous>, transform_indices = @transform_3, window_bounds = array<i64: 128, 8>}, {pipeline_mode = #tpu.pipeline_mode<synchronous>, transform_indices = @transform_4, window_bounds = array<i64: 1, 8>}, {transform_indices = @transform_5, window_bounds = array<i64: 64, 8>}]} {
    %c0 = arith.constant 0 : index
    %c0_0 = arith.constant 0 : index
    %0 = vector.load %arg1[%c0, %c0_0] : memref<64x16xf32, #tpu.memory_space<vmem>>, vector<64x16xf32>
    %1 = arith.truncf %0 : vector<64x16xf32> to vector<64x16xbf16>
    %c0_1 = arith.constant 0 : index
    %c0_2 = arith.constant 0 : index
    %2 = vector.load %arg2[%c0_1, %c0_2] : memref<16x128xbf16, #tpu.memory_space<vmem>>, vector<16x128xbf16>
    %cst = arith.constant dense<0.000000e+00> : vector<64x128xf32>
    %3 = tpu.matmul %1, %2, %cst {dimension_numbers = #tpu.dot_dimension_numbers<[1], [0], [0], [1], [0, 0, 1, 1], [], []>} : vector<64x16xbf16>, vector<16x128xbf16>, vector<64x128xf32> -> vector<64x128xf32>
    %c0_3 = arith.constant 0 : index
    %c0_4 = arith.constant 0 : index
    %4 = vector.load %arg3[%c0_3, %c0_4] : memref<1x128xf32, #tpu.memory_space<vmem>>, vector<1x128xf32>
    %5 = vector.broadcast %4 : vector<1x128xf32> to vector<64x128xf32>
    %6 = arith.addf %3, %5 : vector<64x128xf32>
    %cst_5 = arith.constant 0.000000e+00 : f32
    %7 = vector.broadcast %cst_5 : f32 to vector<64x128xf32>
    %8 = arith.maximumf %6, %7 : vector<64x128xf32>
    %9 = arith.truncf %8 : vector<64x128xf32> to vector<64x128xbf16>
    %c0_6 = arith.constant 0 : index
    %c0_7 = arith.constant 0 : index
    %10 = vector.load %arg4[%c0_6, %c0_7] : memref<128x8xbf16, #tpu.memory_space<vmem>>, vector<128x8xbf16>
    %cst_8 = arith.constant dense<0.000000e+00> : vector<64x8xf32>
    %11 = tpu.matmul %9, %10, %cst_8 {dimension_numbers = #tpu.dot_dimension_numbers<[1], [0], [0], [1], [0, 0, 1, 1], [], []>} : vector<64x128xbf16>, vector<128x8xbf16>, vector<64x8xf32> -> vector<64x8xf32>
    %c0_9 = arith.constant 0 : index
    %c0_10 = arith.constant 0 : index
    %12 = vector.load %arg5[%c0_9, %c0_10] : memref<1x8xf32, #tpu.memory_space<vmem>>, vector<1x8xf32>
    %13 = vector.broadcast %12 : vector<1x8xf32> to vector<64x8xf32>
    %14 = arith.addf %11, %13 : vector<64x8xf32>
    %cst_11 = arith.constant dense<0xFF800000> : vector<64xf32>
    %15 = vector.multi_reduction <maximumf>, %14, %cst_11 [1] : vector<64x8xf32> to vector<64xf32>
    %16 = vector.shape_cast %15 : vector<64xf32> to vector<64x1xf32>
    %17 = vector.broadcast %16 : vector<64x1xf32> to vector<64x8xf32>
    %18 = arith.subf %14, %17 : vector<64x8xf32>
    %19 = math.exp %18 : vector<64x8xf32>
    %cst_12 = arith.constant dense<0.000000e+00> : vector<64xf32>
    %20 = vector.multi_reduction <add>, %19, %cst_12 [1] : vector<64x8xf32> to vector<64xf32>
    %21 = vector.shape_cast %20 : vector<64xf32> to vector<64x1xf32>
    %22 = math.log %21 : vector<64x1xf32>
    %23 = vector.broadcast %22 : vector<64x1xf32> to vector<64x8xf32>
    %24 = arith.subf %18, %23 : vector<64x8xf32>
    %c0_13 = arith.constant 0 : index
    %c0_14 = arith.constant 0 : index
    %25 = vector.load %arg6[%c0_13, %c0_14] : memref<64x8xf32, #tpu.memory_space<vmem>>, vector<64x8xf32>
    tpu.vector_store %arg6[%c0_13, %c0_14], %24 {strides = array<i32>} : memref<64x8xf32, #tpu.memory_space<vmem>>, vector<64x8xf32>,
    return
  }
  func.func @transform_0(%arg0: i32) -> (i32, i32) {
    %c0_i32 = arith.constant 0 : i32
    %c0_i32_0 = arith.constant 0 : i32
    return %arg0, %c0_i32 : i32, i32
  }
  func.func @transform_1(%arg0: i32) -> (i32, i32) {
    %c0_i32 = arith.constant 0 : i32
    %c0_i32_0 = arith.constant 0 : i32
    %c0_i32_1 = arith.constant 0 : i32
    return %c0_i32, %c0_i32_0 : i32, i32
  }
  func.func @transform_2(%arg0: i32) -> (i32, i32) {
    %c0_i32 = arith.constant 0 : i32
    %c0_i32_0 = arith.constant 0 : i32
    %c0_i32_1 = arith.constant 0 : i32
    return %c0_i32, %c0_i32_0 : i32, i32
  }
  func.func @transform_3(%arg0: i32) -> (i32, i32) {
    %c0_i32 = arith.constant 0 : i32
    %c0_i32_0 = arith.constant 0 : i32
    %c0_i32_1 = arith.constant 0 : i32
    return %c0_i32, %c0_i32_0 : i32, i32
  }
  func.func @transform_4(%arg0: i32) -> (i32, i32) {
    %c0_i32 = arith.constant 0 : i32
    %c0_i32_0 = arith.constant 0 : i32
    %c0_i32_1 = arith.constant 0 : i32
    return %c0_i32, %c0_i32_0 : i32, i32
  }
  func.func @transform_5(%arg0: i32) -> (i32, i32) {
    %c0_i32 = arith.constant 0 : i32
    %c0_i32_0 = arith.constant 0 : i32
    return %arg0, %c0_i32 : i32, i32
  }
}

</mosaic_0001>

<llo_original>
// kernel: tpu_custom_call.1
$region0: #{tpu_custom_call.1}
  #allocation0 [shape = 'u32[]', space=smem, size = 0x4, offset = 0x4, fixed_abs, tag = 'smem constant byte address 0x4 - core index']
  #allocation1 [shape = 'u32[144,128]{1,0:T(1,128)}', space=vmem, size = 0x12000, scoped, tag = 'internal scratch']
  %s0 = inlined_call_operand.vmem [shape: f32[64,16], index: 0, kind: input, shape index: {}]
  %s1 = inlined_call_operand.vmem [shape: bf16[16,128], index: 1, kind: input, shape index: {}]
  %s2 = inlined_call_operand.vmem [shape: f32[1,128], index: 2, kind: input, shape index: {}]
  %s3 = inlined_call_operand.vmem [shape: bf16[128,8], index: 3, kind: input, shape index: {}]
  %s4 = inlined_call_operand.vmem [shape: f32[1,8], index: 4, kind: input, shape index: {}]
  %s5 = inlined_call_operand.vmem [shape: f32[64,8], index: 5, kind: output, shape index: {}]
  %s6 = sld [smem:[#allocation0]]
  $region30: #{tpu_custom_call.1} parent=0
    _
  %s8 = ssub.s32 1, %s6
  %s9 = scalar_select 0, %s8, %s6
  // Predicated region
  $region2: #{tpu_custom_call.1} parent=0 // pred_check
    _
  $region3: #{tpu_custom_call.1} parent=0 // pred_check_branch
    %11 = sbr.rel (0) target = $region5
  $region4: #{tpu_custom_call.1} parent=0 // pred_region
    _
  $region5: #{tpu_custom_call.1} parent=0 // pred_fallthru
    _
  // Predicated region
  $region6: #{tpu_custom_call.1} parent=0 // pred_check
    _
  $region7: #{tpu_custom_call.1} parent=0 // pred_check_branch
    %13 = sbr.rel (0) target = $region9
  $region8: #{tpu_custom_call.1} parent=0 // pred_region
    _
  $region9: #{tpu_custom_call.1} parent=0 // pred_fallthru
    _
  // Predicated region
  $region10: #{tpu_custom_call.1} parent=0 // pred_check
    _
  $region11: #{tpu_custom_call.1} parent=0 // pred_check_branch
    %15 = sbr.rel (0) target = $region13
  $region12: #{tpu_custom_call.1} parent=0 // pred_region
    _
  $region13: #{tpu_custom_call.1} parent=0 // pred_fallthru
    _
  // Predicated region
  $region14: #{tpu_custom_call.1} parent=0 // pred_check
    _
  $region15: #{tpu_custom_call.1} parent=0 // pred_check_branch
    %17 = sbr.rel (0) target = $region17
  $region16: #{tpu_custom_call.1} parent=0 // pred_region
    _
  $region17: #{tpu_custom_call.1} parent=0 // pred_fallthru
    _
  // Predicated region
  $region18: #{tpu_custom_call.1} parent=0 // pred_check
    _
  $region19: #{tpu_custom_call.1} parent=0 // pred_check_branch
    %19 = sbr.rel (0) target = $region21
  $region20: #{tpu_custom_call.1} parent=0 // pred_region
    _
  $region21: #{tpu_custom_call.1} parent=0 // pred_fallthru
    _
  %v21 = vld [vmem:[%s0] sm:$0xff]
  %v22 = vld [vmem:[%s0 + $0x8] sm:$0xff]
  %v23 = vld [vmem:[%s0 + $0x10] sm:$0xff]
  %v24 = vld [vmem:[%s0 + $0x18] sm:$0xff]
  %v25 = vld [vmem:[%s0 + $0x20] sm:$0xff]
  %v26 = vld [vmem:[%s0 + $0x28] sm:$0xff]
  %v27 = vld [vmem:[%s0 + $0x30] sm:$0xff]
  %v28 = vld [vmem:[%s0 + $0x38] sm:$0xff]
  %v29 = vpack.c.bf16 %v22, %v21
  %v30 = vpack.c.bf16 %v24, %v23
  %v31 = vpack.c.bf16 %v26, %v25
  %v32 = vpack.c.bf16 %v28, %v27
  %v33 = vld [vmem:[%s1] sm:$0xf]
  %v34 = vld [vmem:[%s1 + $0x4] sm:$0xf]
  %v35 = vld [vmem:[%s2] sm:$0x1]
  %v37 = vlaneseq
  %v38 = vshrl.u32 %v37, 7
  %v39 = vsub.s32 0, %v38
  %v40 = vrot.slane %v35, %v39
  %v44 = vunpack.c.l.b16 %v33
  %v45 = vunpack.c.l.b16 %v34
  %v46 = vpack.c.b16 %v45, %v44
  %vm48 = vcmask 130048
  %v50 = vsel %vm48, %v29, 0
  %v53 = vsel %vm48, %v30, 0
  %v56 = vsel %vm48, %v31, 0
  %v59 = vsel %vm48, %v32, 0
  %61 = vmatprep.subr.bf16.mxu0 0
  %62 = vmatpush1.bf16.msra.mxu0 %v46
  %63 = vmatprep.subr.bf16.mxu0 0
  %64 = vmatpush1.bf16.msra.mxu0 0
  %65 = vmatprep.subr.bf16.mxu0 0
  %66 = vmatpush1.bf16.msra.mxu0 0
  %67 = vmatprep.subr.bf16.mxu0 0
  %68 = vmatpush1.bf16.msra.mxu0 0
  %69 = vmatprep.subr.bf16.mxu0 0
  %70 = vmatpush1.bf16.msra.mxu0 0
  %71 = vmatprep.subr.bf16.mxu0 0
  %72 = vmatpush1.bf16.msra.mxu0 0
  %73 = vmatprep.subr.bf16.mxu0 0
  %74 = vmatpush1.bf16.msra.mxu0 0
  %75 = vmatprep.subr.bf16.mxu0 0
  %76 = vmatpush1.bf16.msra.mxu0 0
  %77 = vmatprep.subr.bf16.mxu0 0
  %78 = vmatpush1.bf16.msra.mxu0 0
  %79 = vmatprep.subr.bf16.mxu0 0
  %80 = vmatpush1.bf16.msra.mxu0 0
  %81 = vmatprep.subr.bf16.mxu0 0
  %82 = vmatpush1.bf16.msra.mxu0 0
  %83 = vmatprep.subr.bf16.mxu0 0
  %84 = vmatpush1.bf16.msra.mxu0 0
  %85 = vmatprep.subr.bf16.mxu0 0
  %86 = vmatpush1.bf16.msra.mxu0 0
  %87 = vmatprep.subr.bf16.mxu0 0
  %88 = vmatpush1.bf16.msra.mxu0 0
  %89 = vmatprep.subr.bf16.mxu0 0
  %90 = vmatpush1.bf16.msra.mxu0 0
  %91 = vmatprep.subr.bf16.mxu0 0
  %92 = vmatpush1.bf16.msra.mxu0 0
  %93 = vmatprep.mubr.bf16.mxu0 0
  %94 = vmatmul.mubr.bf16.gmra.mrb[0].mxu0 %v50
  %v95 = vpop.f32.mrb[0].mxu0
  %v96 = vadd.f32 %v40, %v95
  %v97 = vpop.f32.mrb[0].mxu0
  %v98 = vpop.f32.mrb[0].mxu0
  %v99 = vadd.f32 %v40, %v98
  %v100 = vpop.f32.mrb[0].mxu0
  %101 = vmatprep.mubr.bf16.mxu0 0
  %102 = vmatmul.mubr.bf16.gmra.mrb[0].mxu0 %v53
  %v103 = vpop.f32.mrb[0].mxu0
  %v104 = vadd.f32 %v40, %v103
  %v105 = vpop.f32.mrb[0].mxu0
  %v106 = vpop.f32.mrb[0].mxu0
  %v107 = vadd.f32 %v40, %v106
  %v108 = vpop.f32.mrb[0].mxu0
  %109 = vmatprep.mubr.bf16.mxu0 0
  %110 = vmatmul.mubr.bf16.gmra.mrb[0].mxu0 %v56
  %v111 = vpop.f32.mrb[0].mxu0
  %v112 = vadd.f32 %v40, %v111
  %v113 = vpop.f32.mrb[0].mxu0
  %v114 = vpop.f32.mrb[0].mxu0
  %v115 = vadd.f32 %v40, %v114
  %v116 = vpop.f32.mrb[0].mxu0
  %117 = vmatprep.mubr.bf16.mxu0 0
  %118 = vmatmul.mubr.bf16.gmra.mrb[0].mxu0 %v59
  %v119 = vpop.f32.mrb[0].mxu0
  %v120 = vadd.f32 %v40, %v119
  %v121 = vpop.f32.mrb[0].mxu0
  %v122 = vpop.f32.mrb[0].mxu0
  %v123 = vadd.f32 %v40, %v122
  %v124 = vpop.f32.mrb[0].mxu0
  %125 = vdwg.mxu0
  %v126 = vmax.f32 %v96, 0.0
  %v127 = vmax.f32 %v99, 0.0
  %v128 = vmax.f32 %v104, 0.0
  %v129 = vmax.f32 %v107, 0.0
  %v130 = vmax.f32 %v112, 0.0
  %v131 = vmax.f32 %v115, 0.0
  %v132 = vmax.f32 %v120, 0.0
  %v133 = vmax.f32 %v123, 0.0
  %v134 = vpack.c.bf16 %v127, %v126
  %v135 = vpack.c.bf16 %v129, %v128
  %v136 = vpack.c.bf16 %v131, %v130
  %v137 = vpack.c.bf16 %v133, %v132
  %v138 = vld [vmem:[%s3] sm:$0xf]
  %v139 = vld [vmem:[%s3 + $0x4] sm:$0xf]
  %v140 = vld [vmem:[%s3 + $0x8] sm:$0xf]
  %v141 = vld [vmem:[%s3 + $0xc] sm:$0xf]
  %v142 = vld [vmem:[%s3 + $0x10] sm:$0xf]
  %v143 = vld [vmem:[%s3 + $0x14] sm:$0xf]
  %v144 = vld [vmem:[%s3 + $0x18] sm:$0xf]
  %v145 = vld [vmem:[%s3 + $0x1c] sm:$0xf]
  %v146 = vld [vmem:[%s3 + $0x20] sm:$0xf]
  %v147 = vld [vmem:[%s3 + $0x24] sm:$0xf]
  %v148 = vld [vmem:[%s3 + $0x28] sm:$0xf]
  %v149 = vld [vmem:[%s3 + $0x2c] sm:$0xf]
  %v150 = vld [vmem:[%s3 + $0x30] sm:$0xf]
  %v151 = vld [vmem:[%s3 + $0x34] sm:$0xf]
  %v152 = vld [vmem:[%s3 + $0x38] sm:$0xf]
  %v153 = vld [vmem:[%s3 + $0x3c] sm:$0xf]
  %v154 = vld [vmem:[%s4] sm:$0x1]
  %v156 = vlaneseq
  %v157 = vshrl.u32 %v156, 7
  %v158 = vsub.s32 0, %v157
  %v159 = vrot.slane %v154, %v158
  %v177 = vunpack.c.l.b16 %v138
  %v178 = vunpack.c.l.b16 %v139
  %v179 = vunpack.c.l.b16 %v140
  %v180 = vunpack.c.l.b16 %v141
  %v181 = vunpack.c.l.b16 %v142
  %v182 = vunpack.c.l.b16 %v143
  %v183 = vunpack.c.l.b16 %v144
  %v184 = vunpack.c.l.b16 %v145
  %v185 = vunpack.c.l.b16 %v146
  %v186 = vunpack.c.l.b16 %v147
  %v187 = vunpack.c.l.b16 %v148
  %v188 = vunpack.c.l.b16 %v149
  %v189 = vunpack.c.l.b16 %v150
  %v190 = vunpack.c.l.b16 %v151
  %v191 = vunpack.c.l.b16 %v152
  %v192 = vunpack.c.l.b16 %v153
  %v193 = vpack.c.b16 %v178, %v177
  %v194 = vpack.c.b16 %v180, %v179
  %v195 = vpack.c.b16 %v182, %v181
  %v196 = vpack.c.b16 %v184, %v183
  %v197 = vpack.c.b16 %v186, %v185
  %v198 = vpack.c.b16 %v188, %v187
  %v199 = vpack.c.b16 %v190, %v189
  %v200 = vpack.c.b16 %v192, %v191
  %209 = vmatprep.subr.bf16.mxu0 0
  %210 = vmatpush1.bf16.msra.mxu0 %v193
  %211 = vmatprep.subr.bf16.mxu0 0
  %212 = vmatpush1.bf16.msra.mxu0 %v194
  %213 = vmatprep.subr.bf16.mxu0 0
  %214 = vmatpush1.bf16.msra.mxu0 %v195
  %215 = vmatprep.subr.bf16.mxu0 0
  %216 = vmatpush1.bf16.msra.mxu0 %v196
  %217 = vmatprep.subr.bf16.mxu0 0
  %218 = vmatpush1.bf16.msra.mxu0 %v197
  %219 = vmatprep.subr.bf16.mxu0 0
  %220 = vmatpush1.bf16.msra.mxu0 %v198
  %221 = vmatprep.subr.bf16.mxu0 0
  %222 = vmatpush1.bf16.msra.mxu0 %v199
  %223 = vmatprep.subr.bf16.mxu0 0
  %224 = vmatpush1.bf16.msra.mxu0 %v200
  %225 = vmatprep.subr.bf16.mxu0 0
  %226 = vmatpush1.bf16.msra.mxu0 0
  %227 = vmatprep.subr.bf16.mxu0 0
  %228 = vmatpush1.bf16.msra.mxu0 0
  %229 = vmatprep.subr.bf16.mxu0 0
  %230 = vmatpush1.bf16.msra.mxu0 0
  %231 = vmatprep.subr.bf16.mxu0 0
  %232 = vmatpush1.bf16.msra.mxu0 0
  %233 = vmatprep.subr.bf16.mxu0 0
  %234 = vmatpush1.bf16.msra.mxu0 0
  %235 = vmatprep.subr.bf16.mxu0 0
  %236 = vmatpush1.bf16.msra.mxu0 0
  %237 = vmatprep.subr.bf16.mxu0 0
  %238 = vmatpush1.bf16.msra.mxu0 0
  %239 = vmatprep.subr.bf16.mxu0 0
  %240 = vmatpush1.bf16.msra.mxu0 0
  %241 = vmatprep.mubr.bf16.mxu0 0
  %242 = vmatmul.mubr.bf16.gmra.mrb[0].mxu0 %v134
  %v243 = vpop.f32.mrb[0].mxu0
  %v244 = vadd.f32 %v159, %v243
  %v245 = vpop.f32.mrb[0].mxu0
  %v246 = vpop.f32.mrb[0].mxu0
  %v247 = vadd.f32 %v159, %v246
  %v248 = vpop.f32.mrb[0].mxu0
  %249 = vmatprep.mubr.bf16.mxu0 0
  %250 = vmatmul.mubr.bf16.gmra.mrb[0].mxu0 %v135
  %v251 = vpop.f32.mrb[0].mxu0
  %v252 = vadd.f32 %v159, %v251
  %v253 = vpop.f32.mrb[0].mxu0
  %v254 = vpop.f32.mrb[0].mxu0
  %v255 = vadd.f32 %v159, %v254
  %v256 = vpop.f32.mrb[0].mxu0
  %257 = vmatprep.mubr.bf16.mxu0 0
  %258 = vmatmul.mubr.bf16.gmra.mrb[0].mxu0 %v136
  %v259 = vpop.f32.mrb[0].mxu0
  %v260 = vadd.f32 %v159, %v259
  %v261 = vpop.f32.mrb[0].mxu0
  %v262 = vpop.f32.mrb[0].mxu0
  %v263 = vadd.f32 %v159, %v262
  %v264 = vpop.f32.mrb[0].mxu0
  %265 = vmatprep.mubr.bf16.mxu0 0
  %266 = vmatmul.mubr.bf16.gmra.mrb[0].mxu0 %v137
  %v267 = vpop.f32.mrb[0].mxu0
  %v268 = vadd.f32 %v159, %v267
  %v269 = vpop.f32.mrb[0].mxu0
  %v270 = vpop.f32.mrb[0].mxu0
  %v271 = vadd.f32 %v159, %v270
  %v272 = vpop.f32.mrb[0].mxu0
  %273 = vdwg.mxu0
  %vm274 = vcmask 64512
  %v275 = vsel %vm274, %v244, -inf
  %276 = vmax.xlane.f32.xlu0 %v275
  %v277 = vpop.xlane.xlu0 %276
  %v278 = vsel %vm274, %v247, -inf
  %279 = vmax.xlane.f32.xlu0 %v278
  %v280 = vpop.xlane.xlu0 %279
  %v281 = vsel %vm274, %v252, -inf
  %282 = vmax.xlane.f32.xlu0 %v281
  %v283 = vpop.xlane.xlu0 %282
  %v284 = vsel %vm274, %v255, -inf
  %285 = vmax.xlane.f32.xlu0 %v284
  %v286 = vpop.xlane.xlu0 %285
  %v287 = vsel %vm274, %v260, -inf
  %288 = vmax.xlane.f32.xlu0 %v287
  %v289 = vpop.xlane.xlu0 %288
  %v290 = vsel %vm274, %v263, -inf
  %291 = vmax.xlane.f32.xlu0 %v290
  %v292 = vpop.xlane.xlu0 %291
  %v293 = vsel %vm274, %v268, -inf
  %294 = vmax.xlane.f32.xlu0 %v293
  %v295 = vpop.xlane.xlu0 %294
  %v296 = vsel %vm274, %v271, -inf
  %297 = vmax.xlane.f32.xlu0 %v296
  %v298 = vpop.xlane.xlu0 %297
  %v299 = vsub.f32 %v244, %v277
  %v300 = vsub.f32 %v247, %v280
  %v301 = vsub.f32 %v252, %v283
  %v302 = vsub.f32 %v255, %v286
  %v303 = vsub.f32 %v260, %v289
  %v304 = vsub.f32 %v263, %v292
  %v305 = vsub.f32 %v268, %v295
  %v306 = vsub.f32 %v271, %v298
  %v307 = vmul.f32 %v299, 1.442695
  %v308 = vpow.pop %v307
  %v309 = vmul.f32 %v300, 1.442695
  %v310 = vpow.pop %v309
  %v311 = vmul.f32 %v301, 1.442695
  %v312 = vpow.pop %v311
  %v313 = vmul.f32 %v302, 1.442695
  %v314 = vpow.pop %v313
  %v315 = vmul.f32 %v303, 1.442695
  %v316 = vpow.pop %v315
  %v317 = vmul.f32 %v304, 1.442695
  %v318 = vpow.pop %v317
  %v319 = vmul.f32 %v305, 1.442695
  %v320 = vpow.pop %v319
  %v321 = vmul.f32 %v306, 1.442695
  %v322 = vpow.pop %v321
  %v323 = vsel %vm274, %v308, 0.0
  %324 = vadd.xlane.f32.xlu0 %v323
  %v325 = vpop.xlane.xlu0 %324
  %v326 = vsel %vm274, %v310, 0.0
  %327 = vadd.xlane.f32.xlu0 %v326
  %v328 = vpop.xlane.xlu0 %327
  %v329 = vsel %vm274, %v312, 0.0
  %330 = vadd.xlane.f32.xlu0 %v329
  %v331 = vpop.xlane.xlu0 %330
  %v332 = vsel %vm274, %v314, 0.0
  %333 = vadd.xlane.f32.xlu0 %v332
  %v334 = vpop.xlane.xlu0 %333
  %v335 = vsel %vm274, %v316, 0.0
  %336 = vadd.xlane.f32.xlu0 %v335
  %v337 = vpop.xlane.xlu0 %336
  %v338 = vsel %vm274, %v318, 0.0
  %339 = vadd.xlane.f32.xlu0 %v338
  %v340 = vpop.xlane.xlu0 %339
  %v341 = vsel %vm274, %v320, 0.0
  %342 = vadd.xlane.f32.xlu0 %v341
  %v343 = vpop.xlane.xlu0 %342
  %v344 = vsel %vm274, %v322, 0.0
  %345 = vadd.xlane.f32.xlu0 %v344
  %v346 = vpop.xlane.xlu0 %345
  %v347 = vlog2.pop %v325
  %v348 = vmul.f32 %v347, 0.6931472
  %v349 = vlog2.pop %v328
  %v350 = vmul.f32 %v349, 0.6931472
  %v351 = vlog2.pop %v331
  %v352 = vmul.f32 %v351, 0.6931472
  %v353 = vlog2.pop %v334
  %v354 = vmul.f32 %v353, 0.6931472
  %v355 = vlog2.pop %v337
  %v356 = vmul.f32 %v355, 0.6931472
  %v357 = vlog2.pop %v340
  %v358 = vmul.f32 %v357, 0.6931472
  %v359 = vlog2.pop %v343
  %v360 = vmul.f32 %v359, 0.6931472
  %v361 = vlog2.pop %v346
  %v362 = vmul.f32 %v361, 0.6931472
  %v363 = vsub.f32 %v299, %v348
  %v364 = vsub.f32 %v300, %v350
  %v365 = vsub.f32 %v301, %v352
  %v366 = vsub.f32 %v302, %v354
  %v367 = vsub.f32 %v303, %v356
  %v368 = vsub.f32 %v304, %v358
  %v369 = vsub.f32 %v305, %v360
  %v370 = vsub.f32 %v306, %v362
  %371 = vst.msk [vmem:[%s5] sm:$0xff] %vm274, %v363
  %372 = vst.msk [vmem:[%s5 + $0x8] sm:$0xff] %vm274, %v364
  %373 = vst.msk [vmem:[%s5 + $0x10] sm:$0xff] %vm274, %v365
  %374 = vst.msk [vmem:[%s5 + $0x18] sm:$0xff] %vm274, %v366
  %375 = vst.msk [vmem:[%s5 + $0x20] sm:$0xff] %vm274, %v367
  %376 = vst.msk [vmem:[%s5 + $0x28] sm:$0xff] %vm274, %v368
  %377 = vst.msk [vmem:[%s5 + $0x30] sm:$0xff] %vm274, %v369
  %378 = vst.msk [vmem:[%s5 + $0x38] sm:$0xff] %vm274, %v370
  // Predicated region
  $region22: #{tpu_custom_call.1} parent=0 // pred_check
    _
  $region23: #{tpu_custom_call.1} parent=0 // pred_check_branch
    %380 = sbr.rel (0) target = $region25
  $region24: #{tpu_custom_call.1} parent=0 // pred_region
    _
  $region25: #{tpu_custom_call.1} parent=0 // pred_fallthru
    _
  // Predicated region
  $region26: #{tpu_custom_call.1} parent=0 // pred_check
    _
  $region27: #{tpu_custom_call.1} parent=0 // pred_check_branch
    %382 = sbr.rel (0) target = $region29
  $region28: #{tpu_custom_call.1} parent=0 // pred_region
    _
  $region29: #{tpu_custom_call.1} parent=0 // pred_fallthru
    _

</llo_original>
